<compile_context>
chip_gen: v7x
topology: tpu7x:2x2x1
jax: 0.10.0
libtpu: 0.0.40
codegen_flags: <defaults>
</compile_context>

<pallas_src>
import functools

import jax
import jax.numpy as jnp
from jax.experimental import pallas as pl
from jax.experimental.pallas import tpu as pltpu

LANE = 128     # vreg lane width (last dim) — lane-dense outputs avoid vst.msk
SUBLANE = 8    # f32 sublane count (second-to-last dim)


# ---------------------------------------------------------------------------
# activations (computed inside the kernel; all satisfy act(0) == 0)
# ---------------------------------------------------------------------------
def _relu(x):
    return jnp.maximum(x, 0.0)


def _elu(x):
    return jnp.where(x > 0, x, jnp.exp(x) - 1.0)


def _gelu(x):
    return jax.nn.gelu(x)


def _swish(x):
    return x * jax.nn.sigmoid(x)


_ACTIVATIONS = {"relu": _relu, "elu": _elu, "gelu": _gelu, "swish": _swish}


# ---------------------------------------------------------------------------
# single fused Pallas kernel
# ---------------------------------------------------------------------------
def _fused_resnet_kernel(*refs, act_fn, block_num):
    """Entire forward pass in one kernel; activations never leave VMEM.

    ref layout: x, Wf, bf, [W1, b1, W2, b2] * block_num, Wl, bl, out
    Weights come pre-transposed/padded as [in_p, out_p]; biases as [1, out_p].
    """
    x_ref = refs[0]
    o_ref = refs[-1]

    x = x_ref[...]

    # first_layer + activation
    wf, bf = refs[1], refs[2]
    h = act_fn(jnp.dot(x, wf[...], preferred_element_type=jnp.float32) + bf[...])

    # residual blocks: act( fc2(act(fc1(h))) + h )
    for i in range(block_num):
        w1, b1, w2, b2 = refs[3 + 4 * i: 7 + 4 * i]
        y = act_fn(jnp.dot(h, w1[...], preferred_element_type=jnp.float32) + b1[...])
        y = jnp.dot(y, w2[...], preferred_element_type=jnp.float32) + b2[...]
        h = act_fn(y + h)

    # last_layer (no activation)
    wl, bl = refs[3 + 4 * block_num], refs[4 + 4 * block_num]
    out = jnp.dot(h, wl[...], preferred_element_type=jnp.float32) + bl[...]
    o_ref[...] = out.astype(o_ref.dtype)


# ---------------------------------------------------------------------------
# wrapper: pad to lane/sublane multiples, pre-transpose weights, one call
# ---------------------------------------------------------------------------
def _ceil_to(n, m):
    return ((n + m - 1) // m) * m


def _pack_linear(w, b, in_p, out_p):
    """PyTorch layout W=[out,in], b=[out] -> W^T padded [in_p,out_p], b [1,out_p]."""
    w_t = jnp.asarray(w, jnp.float32).T
    w_pad = jnp.pad(w_t, ((0, in_p - w_t.shape[0]), (0, out_p - w_t.shape[1])))
    b_pad = jnp.pad(jnp.asarray(b, jnp.float32), (0, out_p - b.shape[0]))
    return w_pad, b_pad.reshape(1, out_p)


def resnet_forward(params, x, activation_fun="relu"):
    act_fn = _ACTIVATIONS[activation_fun]

    B, I = x.shape
    H = params["first"][0].shape[0]
    O = params["last"][0].shape[0]
    block_num = len(params["blocks"])

    B_p = _ceil_to(B, SUBLANE)
    I_p = _ceil_to(I, LANE)
    H_p = _ceil_to(H, LANE)
    O_p = _ceil_to(O, LANE)

    x_pad = jnp.pad(x.astype(jnp.float32), ((0, B_p - B), (0, I_p - I)))

    operands = [x_pad]
    wf, bf = _pack_linear(*params["first"], I_p, H_p)
    operands += [wf, bf]
    for (w1, b1), (w2, b2) in params["blocks"]:
        operands += [*_pack_linear(w1, b1, H_p, H_p),
                     *_pack_linear(w2, b2, H_p, H_p)]
    wl, bl = _pack_linear(*params["last"], H_p, O_p)
    operands += [wl, bl]

    def full_spec(a):
        nd = a.ndim
        return pl.BlockSpec(a.shape, lambda: (0,) * nd)

    in_specs = [full_spec(a) for a in operands]
    out_spec = pl.BlockSpec((B_p, O_p), lambda: (0, 0))

    # advisory cost so XLA doesn't mis-schedule around a near-zero-cost call
    flops = (2 * B_p * I_p * H_p
             + block_num * 2 * (2 * B_p * H_p * H_p)
             + 2 * B_p * H_p * O_p)
    bytes_accessed = (sum(int(a.size) * a.dtype.itemsize for a in operands)
                      + B_p * O_p * 4)
    transcendentals = 0 if activation_fun == "relu" else B_p * H_p * (1 + 2 * block_num)

    out_pad = pl.pallas_call(
        functools.partial(_fused_resnet_kernel, act_fn=act_fn, block_num=block_num),
        out_shape=jax.ShapeDtypeStruct((B_p, O_p), jnp.float32),
        in_specs=in_specs,
        out_specs=out_spec,
        cost_estimate=pl.CostEstimate(
            flops=flops,
            transcendentals=transcendentals,
            bytes_accessed=bytes_accessed,
        ),
        compiler_params=pltpu.CompilerParams(vmem_limit_bytes=32 * 1024 * 1024),
    )(*operands)

    return out_pad[:B, :O]


# ---------------------------------------------------------------------------
# parameter construction (deterministic, PyTorch Linear shapes: W=[out,in])
# ---------------------------------------------------------------------------
def init_resnet_params(key, input_size, output_size, hidden_units, block_num):
    def linear_params(k, in_f, out_f):
        kw, kb = jax.random.split(k)
        scale = 1.0 / jnp.sqrt(in_f)
        w = jax.random.uniform(kw, (out_f, in_f), jnp.float32, -scale, scale)
        b = jax.random.uniform(kb, (out_f,), jnp.float32, -scale, scale)
        return w, b

    keys = jax.random.split(key, 2 + 2 * block_num)
    params = {}
    params["first"] = linear_params(keys[0], input_size, hidden_units)
    params["blocks"] = []
    for i in range(block_num):
        fc1 = linear_params(keys[1 + 2 * i], hidden_units, hidden_units)
        fc2 = linear_params(keys[2 + 2 * i], hidden_units, hidden_units)
        params["blocks"].append((fc1, fc2))
    params["last"] = linear_params(keys[-1], hidden_units, output_size)
    return params


# ---------------------------------------------------------------------------
# main
# ---------------------------------------------------------------------------
if __name__ == "__main__":
    batch = 8
    input_size = 16
    hidden_units = 32
    output_size = 4
    block_num = 2
    activation_fun = "relu"

    key = jax.random.PRNGKey(0)
    k_params, k_x = jax.random.split(key)
    params = init_resnet_params(k_params, input_size, output_size,
                                hidden_units, block_num)
    x = jax.random.normal(k_x, (batch, input_size), jnp.float32)

    fwd = jax.jit(functools.partial(resnet_forward, activation_fun=activation_fun))
    out = fwd(params, x)
    jax.block_until_ready(out)

    # pure-JAX reference check
    def ref_forward(params, x):
        act = _ACTIVATIONS[activation_fun]
        w, b = params["first"]
        y = act(x @ w.T + b)
        for (w1, b1), (w2, b2) in params["blocks"]:
            h = act(y @ w1.T + b1)
            h = h @ w2.T + b2
            y = act(h + y)
        w, b = params["last"]
        return y @ w.T + b

    ref = ref_forward(params, x)
    assert out.shape == (batch, output_size)
    assert jnp.allclose(out, ref, atol=1e-5, rtol=1e-5)

    print("KERNEL_OK")
</pallas_src>

<mosaic_0001>
module attributes {stable_mosaic.version = 11 : i64} {
  func.func @_fused_resnet_kernel(%arg0: memref<8x128xf32, #tpu.memory_space<vmem>>, %arg1: memref<128x128xf32, #tpu.memory_space<vmem>>, %arg2: memref<1x128xf32, #tpu.memory_space<vmem>>, %arg3: memref<128x128xf32, #tpu.memory_space<vmem>>, %arg4: memref<1x128xf32, #tpu.memory_space<vmem>>, %arg5: memref<128x128xf32, #tpu.memory_space<vmem>>, %arg6: memref<1x128xf32, #tpu.memory_space<vmem>>, %arg7: memref<128x128xf32, #tpu.memory_space<vmem>>, %arg8: memref<1x128xf32, #tpu.memory_space<vmem>>, %arg9: memref<128x128xf32, #tpu.memory_space<vmem>>, %arg10: memref<1x128xf32, #tpu.memory_space<vmem>>, %arg11: memref<128x128xf32, #tpu.memory_space<vmem>>, %arg12: memref<1x128xf32, #tpu.memory_space<vmem>>, %arg13: memref<8x128xf32, #tpu.memory_space<vmem>>) attributes {dimension_semantics = [], scalar_prefetch = 0 : i64, scratch_operands = 0 : i64, tpu.core_type = #tpu.core_type<tc>} {
    %c0 = arith.constant 0 : index
    %c0_0 = arith.constant 0 : index
    %0 = vector.load %arg0[%c0, %c0_0] : memref<8x128xf32, #tpu.memory_space<vmem>>, vector<8x128xf32>
    %c0_1 = arith.constant 0 : index
    %c0_2 = arith.constant 0 : index
    %1 = vector.load %arg1[%c0_1, %c0_2] : memref<128x128xf32, #tpu.memory_space<vmem>>, vector<128x128xf32>
    %cst = arith.constant dense<0.000000e+00> : vector<8x128xf32>
    %2 = tpu.matmul %0, %1, %cst {dimension_numbers = #tpu.dot_dimension_numbers<[1], [0], [0], [1], [0, 0, 1, 1], [], []>} : vector<8x128xf32>, vector<128x128xf32>, vector<8x128xf32> -> vector<8x128xf32>
    %c0_3 = arith.constant 0 : index
    %c0_4 = arith.constant 0 : index
    %3 = vector.load %arg2[%c0_3, %c0_4] : memref<1x128xf32, #tpu.memory_space<vmem>>, vector<1x128xf32>
    %4 = vector.broadcast %3 : vector<1x128xf32> to vector<8x128xf32>
    %5 = arith.addf %2, %4 : vector<8x128xf32>
    %cst_5 = arith.constant 0.000000e+00 : f32
    %6 = vector.broadcast %cst_5 : f32 to vector<8x128xf32>
    %7 = arith.maximumf %5, %6 : vector<8x128xf32>
    %c0_6 = arith.constant 0 : index
    %c0_7 = arith.constant 0 : index
    %8 = vector.load %arg3[%c0_6, %c0_7] : memref<128x128xf32, #tpu.memory_space<vmem>>, vector<128x128xf32>
    %cst_8 = arith.constant dense<0.000000e+00> : vector<8x128xf32>
    %9 = tpu.matmul %7, %8, %cst_8 {dimension_numbers = #tpu.dot_dimension_numbers<[1], [0], [0], [1], [0, 0, 1, 1], [], []>} : vector<8x128xf32>, vector<128x128xf32>, vector<8x128xf32> -> vector<8x128xf32>
    %c0_9 = arith.constant 0 : index
    %c0_10 = arith.constant 0 : index
    %10 = vector.load %arg4[%c0_9, %c0_10] : memref<1x128xf32, #tpu.memory_space<vmem>>, vector<1x128xf32>
    %11 = vector.broadcast %10 : vector<1x128xf32> to vector<8x128xf32>
    %12 = arith.addf %9, %11 : vector<8x128xf32>
    %cst_11 = arith.constant 0.000000e+00 : f32
    %13 = vector.broadcast %cst_11 : f32 to vector<8x128xf32>
    %14 = arith.maximumf %12, %13 : vector<8x128xf32>
    %c0_12 = arith.constant 0 : index
    %c0_13 = arith.constant 0 : index
    %15 = vector.load %arg5[%c0_12, %c0_13] : memref<128x128xf32, #tpu.memory_space<vmem>>, vector<128x128xf32>
    %cst_14 = arith.constant dense<0.000000e+00> : vector<8x128xf32>
    %16 = tpu.matmul %14, %15, %cst_14 {dimension_numbers = #tpu.dot_dimension_numbers<[1], [0], [0], [1], [0, 0, 1, 1], [], []>} : vector<8x128xf32>, vector<128x128xf32>, vector<8x128xf32> -> vector<8x128xf32>
    %c0_15 = arith.constant 0 : index
    %c0_16 = arith.constant 0 : index
    %17 = vector.load %arg6[%c0_15, %c0_16] : memref<1x128xf32, #tpu.memory_space<vmem>>, vector<1x128xf32>
    %18 = vector.broadcast %17 : vector<1x128xf32> to vector<8x128xf32>
    %19 = arith.addf %16, %18 : vector<8x128xf32>
    %20 = arith.addf %19, %7 : vector<8x128xf32>
    %cst_17 = arith.constant 0.000000e+00 : f32
    %21 = vector.broadcast %cst_17 : f32 to vector<8x128xf32>
    %22 = arith.maximumf %20, %21 : vector<8x128xf32>
    %c0_18 = arith.constant 0 : index
    %c0_19 = arith.constant 0 : index
    %23 = vector.load %arg7[%c0_18, %c0_19] : memref<128x128xf32, #tpu.memory_space<vmem>>, vector<128x128xf32>
    %cst_20 = arith.constant dense<0.000000e+00> : vector<8x128xf32>
    %24 = tpu.matmul %22, %23, %cst_20 {dimension_numbers = #tpu.dot_dimension_numbers<[1], [0], [0], [1], [0, 0, 1, 1], [], []>} : vector<8x128xf32>, vector<128x128xf32>, vector<8x128xf32> -> vector<8x128xf32>
    %c0_21 = arith.constant 0 : index
    %c0_22 = arith.constant 0 : index
    %25 = vector.load %arg8[%c0_21, %c0_22] : memref<1x128xf32, #tpu.memory_space<vmem>>, vector<1x128xf32>
    %26 = vector.broadcast %25 : vector<1x128xf32> to vector<8x128xf32>
    %27 = arith.addf %24, %26 : vector<8x128xf32>
    %cst_23 = arith.constant 0.000000e+00 : f32
    %28 = vector.broadcast %cst_23 : f32 to vector<8x128xf32>
    %29 = arith.maximumf %27, %28 : vector<8x128xf32>
    %c0_24 = arith.constant 0 : index
    %c0_25 = arith.constant 0 : index
    %30 = vector.load %arg9[%c0_24, %c0_25] : memref<128x128xf32, #tpu.memory_space<vmem>>, vector<128x128xf32>
    %cst_26 = arith.constant dense<0.000000e+00> : vector<8x128xf32>
    %31 = tpu.matmul %29, %30, %cst_26 {dimension_numbers = #tpu.dot_dimension_numbers<[1], [0], [0], [1], [0, 0, 1, 1], [], []>} : vector<8x128xf32>, vector<128x128xf32>, vector<8x128xf32> -> vector<8x128xf32>
    %c0_27 = arith.constant 0 : index
    %c0_28 = arith.constant 0 : index
    %32 = vector.load %arg10[%c0_27, %c0_28] : memref<1x128xf32, #tpu.memory_space<vmem>>, vector<1x128xf32>
    %33 = vector.broadcast %32 : vector<1x128xf32> to vector<8x128xf32>
    %34 = arith.addf %31, %33 : vector<8x128xf32>
    %35 = arith.addf %34, %22 : vector<8x128xf32>
    %cst_29 = arith.constant 0.000000e+00 : f32
    %36 = vector.broadcast %cst_29 : f32 to vector<8x128xf32>
    %37 = arith.maximumf %35, %36 : vector<8x128xf32>
    %c0_30 = arith.constant 0 : index
    %c0_31 = arith.constant 0 : index
    %38 = vector.load %arg11[%c0_30, %c0_31] : memref<128x128xf32, #tpu.memory_space<vmem>>, vector<128x128xf32>
    %cst_32 = arith.constant dense<0.000000e+00> : vector<8x128xf32>
    %39 = tpu.matmul %37, %38, %cst_32 {dimension_numbers = #tpu.dot_dimension_numbers<[1], [0], [0], [1], [0, 0, 1, 1], [], []>} : vector<8x128xf32>, vector<128x128xf32>, vector<8x128xf32> -> vector<8x128xf32>
    %c0_33 = arith.constant 0 : index
    %c0_34 = arith.constant 0 : index
    %40 = vector.load %arg12[%c0_33, %c0_34] : memref<1x128xf32, #tpu.memory_space<vmem>>, vector<1x128xf32>
    %41 = vector.broadcast %40 : vector<1x128xf32> to vector<8x128xf32>
    %42 = arith.addf %39, %41 : vector<8x128xf32>
    %c0_35 = arith.constant 0 : index
    %c0_36 = arith.constant 0 : index
    %43 = vector.load %arg13[%c0_35, %c0_36] : memref<8x128xf32, #tpu.memory_space<vmem>>, vector<8x128xf32>
    tpu.vector_store %arg13[%c0_35, %c0_36], %42 {strides = array<i32>} : memref<8x128xf32, #tpu.memory_space<vmem>>, vector<8x128xf32>,
    return
  }
}

</mosaic_0001>

<llo_original>
// kernel: resnet_forward.1
$region0: #{resnet_forward.1}
  #allocation0 [shape = 'u32[]', space=smem, size = 0x4, offset = 0x4, fixed_abs, tag = 'smem constant byte address 0x4 - core index']
  #allocation1 [shape = 'u32[144,128]{1,0:T(1,128)}', space=vmem, size = 0x12000, scoped, tag = 'internal scratch']
  %s0 = inlined_call_operand.vmem [shape: f32[8,128], index: 0, kind: input, shape index: {}]
  %s1 = inlined_call_operand.vmem [shape: f32[128,128], index: 1, kind: input, shape index: {}]
  %s2 = inlined_call_operand.vmem [shape: f32[1,128], index: 2, kind: input, shape index: {}]
  %s3 = inlined_call_operand.vmem [shape: f32[128,128], index: 3, kind: input, shape index: {}]
  %s4 = inlined_call_operand.vmem [shape: f32[1,128], index: 4, kind: input, shape index: {}]
  %s5 = inlined_call_operand.vmem [shape: f32[128,128], index: 5, kind: input, shape index: {}]
  %s6 = inlined_call_operand.vmem [shape: f32[1,128], index: 6, kind: input, shape index: {}]
  %s7 = inlined_call_operand.vmem [shape: f32[128,128], index: 7, kind: input, shape index: {}]
  %s8 = inlined_call_operand.vmem [shape: f32[1,128], index: 8, kind: input, shape index: {}]
  %s9 = inlined_call_operand.vmem [shape: f32[128,128], index: 9, kind: input, shape index: {}]
  %s10 = inlined_call_operand.vmem [shape: f32[1,128], index: 10, kind: input, shape index: {}]
  %s11 = inlined_call_operand.vmem [shape: f32[128,128], index: 11, kind: input, shape index: {}]
  %s12 = inlined_call_operand.vmem [shape: f32[1,128], index: 12, kind: input, shape index: {}]
  %s13 = inlined_call_operand.vmem [shape: f32[8,128], index: 13, kind: output, shape index: {}]
  %s14 = sld [smem:[#allocation0]]
  $region62: #{resnet_forward.1} parent=0
    _
  %s16 = ssub.s32 1, %s14
  %s17 = scalar_select 0, %s16, %s14
  // Predicated region
  $region2: #{resnet_forward.1} parent=0 // pred_check
    _
  $region3: #{resnet_forward.1} parent=0 // pred_check_branch
    %19 = sbr.rel (0) target = $region5
  $region4: #{resnet_forward.1} parent=0 // pred_region
    _
  $region5: #{resnet_forward.1} parent=0 // pred_fallthru
    _
  // Predicated region
  $region6: #{resnet_forward.1} parent=0 // pred_check
    _
  $region7: #{resnet_forward.1} parent=0 // pred_check_branch
    %21 = sbr.rel (0) target = $region9
  $region8: #{resnet_forward.1} parent=0 // pred_region
    _
  $region9: #{resnet_forward.1} parent=0 // pred_fallthru
    _
  // Predicated region
  $region10: #{resnet_forward.1} parent=0 // pred_check
    _
  $region11: #{resnet_forward.1} parent=0 // pred_check_branch
    %23 = sbr.rel (0) target = $region13
  $region12: #{resnet_forward.1} parent=0 // pred_region
    _
  $region13: #{resnet_forward.1} parent=0 // pred_fallthru
    _
  // Predicated region
  $region14: #{resnet_forward.1} parent=0 // pred_check
    _
  $region15: #{resnet_forward.1} parent=0 // pred_check_branch
    %25 = sbr.rel (0) target = $region17
  $region16: #{resnet_forward.1} parent=0 // pred_region
    _
  $region17: #{resnet_forward.1} parent=0 // pred_fallthru
    _
  // Predicated region
  $region18: #{resnet_forward.1} parent=0 // pred_check
    _
  $region19: #{resnet_forward.1} parent=0 // pred_check_branch
    %27 = sbr.rel (0) target = $region21
  $region20: #{resnet_forward.1} parent=0 // pred_region
    _
  $region21: #{resnet_forward.1} parent=0 // pred_fallthru
    _
  // Predicated region
  $region22: #{resnet_forward.1} parent=0 // pred_check
    _
  $region23: #{resnet_forward.1} parent=0 // pred_check_branch
    %29 = sbr.rel (0) target = $region25
  $region24: #{resnet_forward.1} parent=0 // pred_region
    _
  $region25: #{resnet_forward.1} parent=0 // pred_fallthru
    _
  // Predicated region
  $region26: #{resnet_forward.1} parent=0 // pred_check
    _
  $region27: #{resnet_forward.1} parent=0 // pred_check_branch
    %31 = sbr.rel (0) target = $region29
  $region28: #{resnet_forward.1} parent=0 // pred_region
    _
  $region29: #{resnet_forward.1} parent=0 // pred_fallthru
    _
  // Predicated region
  $region30: #{resnet_forward.1} parent=0 // pred_check
    _
  $region31: #{resnet_forward.1} parent=0 // pred_check_branch
    %33 = sbr.rel (0) target = $region33
  $region32: #{resnet_forward.1} parent=0 // pred_region
    _
  $region33: #{resnet_forward.1} parent=0 // pred_fallthru
    _
  // Predicated region
  $region34: #{resnet_forward.1} parent=0 // pred_check
    _
  $region35: #{resnet_forward.1} parent=0 // pred_check_branch
    %35 = sbr.rel (0) target = $region37
  $region36: #{resnet_forward.1} parent=0 // pred_region
    _
  $region37: #{resnet_forward.1} parent=0 // pred_fallthru
    _
  // Predicated region
  $region38: #{resnet_forward.1} parent=0 // pred_check
    _
  $region39: #{resnet_forward.1} parent=0 // pred_check_branch
    %37 = sbr.rel (0) target = $region41
  $region40: #{resnet_forward.1} parent=0 // pred_region
    _
  $region41: #{resnet_forward.1} parent=0 // pred_fallthru
    _
  // Predicated region
  $region42: #{resnet_forward.1} parent=0 // pred_check
    _
  $region43: #{resnet_forward.1} parent=0 // pred_check_branch
    %39 = sbr.rel (0) target = $region45
  $region44: #{resnet_forward.1} parent=0 // pred_region
    _
  $region45: #{resnet_forward.1} parent=0 // pred_fallthru
    _
  // Predicated region
  $region46: #{resnet_forward.1} parent=0 // pred_check
    _
  $region47: #{resnet_forward.1} parent=0 // pred_check_branch
    %41 = sbr.rel (0) target = $region49
  $region48: #{resnet_forward.1} parent=0 // pred_region
    _
  $region49: #{resnet_forward.1} parent=0 // pred_fallthru
    _
  // Predicated region
  $region50: #{resnet_forward.1} parent=0 // pred_check
    _
  $region51: #{resnet_forward.1} parent=0 // pred_check_branch
    %43 = sbr.rel (0) target = $region53
  $region52: #{resnet_forward.1} parent=0 // pred_region
    _
  $region53: #{resnet_forward.1} parent=0 // pred_fallthru
    _
  %v44 = vld [vmem:[%s0] sm:$0xff]
  %v45 = vld [vmem:[%s1] sm:$0xff]
  %v46 = vld [vmem:[%s1 + $0x8] sm:$0xff]
  %v47 = vld [vmem:[%s1 + $0x10] sm:$0xff]
  %v48 = vld [vmem:[%s1 + $0x18] sm:$0xff]
  %v49 = vld [vmem:[%s1 + $0x20] sm:$0xff]
  %v50 = vld [vmem:[%s1 + $0x28] sm:$0xff]
  %v51 = vld [vmem:[%s1 + $0x30] sm:$0xff]
  %v52 = vld [vmem:[%s1 + $0x38] sm:$0xff]
  %v53 = vld [vmem:[%s1 + $0x40] sm:$0xff]
  %v54 = vld [vmem:[%s1 + $0x48] sm:$0xff]
  %v55 = vld [vmem:[%s1 + $0x50] sm:$0xff]
  %v56 = vld [vmem:[%s1 + $0x58] sm:$0xff]
  %v57 = vld [vmem:[%s1 + $0x60] sm:$0xff]
  %v58 = vld [vmem:[%s1 + $0x68] sm:$0xff]
  %v59 = vld [vmem:[%s1 + $0x70] sm:$0xff]
  %v60 = vld [vmem:[%s1 + $0x78] sm:$0xff]
  %v61 = vld [vmem:[%s2] sm:$0x1]
  %v63 = vlaneseq
  %v64 = vshrl.u32 %v63, 7
  %v65 = vsub.s32 0, %v64
  %v66 = vrot.slane %v61, %v65
  %68 = vmatprep.subr.mxu0 0.0
  %69 = vmatpush1.msra.mxu0 %v45
  %70 = vmatprep.subr.mxu0 0.0
  %71 = vmatpush1.msra.mxu0 %v46
  %72 = vmatprep.subr.mxu0 0.0
  %73 = vmatpush1.msra.mxu0 %v47
  %74 = vmatprep.subr.mxu0 0.0
  %75 = vmatpush1.msra.mxu0 %v48
  %76 = vmatprep.subr.mxu0 0.0
  %77 = vmatpush1.msra.mxu0 %v49
  %78 = vmatprep.subr.mxu0 0.0
  %79 = vmatpush1.msra.mxu0 %v50
  %80 = vmatprep.subr.mxu0 0.0
  %81 = vmatpush1.msra.mxu0 %v51
  %82 = vmatprep.subr.mxu0 0.0
  %83 = vmatpush1.msra.mxu0 %v52
  %84 = vmatprep.subr.mxu0 0.0
  %85 = vmatpush1.msra.mxu0 %v53
  %86 = vmatprep.subr.mxu0 0.0
  %87 = vmatpush1.msra.mxu0 %v54
  %88 = vmatprep.subr.mxu0 0.0
  %89 = vmatpush1.msra.mxu0 %v55
  %90 = vmatprep.subr.mxu0 0.0
  %91 = vmatpush1.msra.mxu0 %v56
  %92 = vmatprep.subr.mxu0 0.0
  %93 = vmatpush1.msra.mxu0 %v57
  %94 = vmatprep.subr.mxu0 0.0
  %95 = vmatpush1.msra.mxu0 %v58
  %96 = vmatprep.subr.mxu0 0.0
  %97 = vmatpush1.msra.mxu0 %v59
  %98 = vmatprep.subr.mxu0 0.0
  %99 = vmatpush1.msra.mxu0 %v60
  %100 = vmatprep.subr.mxu0 0.0
  %101 = vmatpush1.msra.mxu0 0.0
  %102 = vmatprep.subr.mxu0 0.0
  %103 = vmatpush1.msra.mxu0 0.0
  %104 = vmatprep.subr.mxu0 0.0
  %105 = vmatpush1.msra.mxu0 0.0
  %106 = vmatprep.subr.mxu0 0.0
  %107 = vmatpush1.msra.mxu0 0.0
  %108 = vmatprep.subr.mxu0 0.0
  %109 = vmatpush1.msra.mxu0 0.0
  %110 = vmatprep.subr.mxu0 0.0
  %111 = vmatpush1.msra.mxu0 0.0
  %112 = vmatprep.subr.mxu0 0.0
  %113 = vmatpush1.msra.mxu0 0.0
  %114 = vmatprep.subr.mxu0 0.0
  %115 = vmatpush1.msra.mxu0 0.0
  %116 = vmatprep.subr.mxu0 0.0
  %117 = vmatpush1.msra.mxu0 0.0
  %118 = vmatprep.subr.mxu0 0.0
  %119 = vmatpush1.msra.mxu0 0.0
  %120 = vmatprep.subr.mxu0 0.0
  %121 = vmatpush1.msra.mxu0 0.0
  %122 = vmatprep.subr.mxu0 0.0
  %123 = vmatpush1.msra.mxu0 0.0
  %124 = vmatprep.subr.mxu0 0.0
  %125 = vmatpush1.msra.mxu0 0.0
  %126 = vmatprep.subr.mxu0 0.0
  %127 = vmatpush1.msra.mxu0 0.0
  %128 = vmatprep.subr.mxu0 0.0
  %129 = vmatpush1.msra.mxu0 0.0
  %130 = vmatprep.subr.mxu0 0.0
  %131 = vmatpush1.msra.mxu0 0.0
  %132 = vmatprep.mubr.f32.mxu0 0.0
  %133 = vmatmul.mubr.f32.gmra.mrb[0].mxu0 %v44
  %v134 = vpop.f32.mrb[0].mxu0
  %v135 = vadd.f32 %v66, %v134
  %v136 = vpop.f32.mrb[0].mxu0
  %137 = vdwg.mxu0
  %v138 = vmax.f32 %v135, 0.0
  %v139 = vld [vmem:[%s3] sm:$0xff]
  %v140 = vld [vmem:[%s3 + $0x8] sm:$0xff]
  %v141 = vld [vmem:[%s3 + $0x10] sm:$0xff]
  %v142 = vld [vmem:[%s3 + $0x18] sm:$0xff]
  %v143 = vld [vmem:[%s3 + $0x20] sm:$0xff]
  %v144 = vld [vmem:[%s3 + $0x28] sm:$0xff]
  %v145 = vld [vmem:[%s3 + $0x30] sm:$0xff]
  %v146 = vld [vmem:[%s3 + $0x38] sm:$0xff]
  %v147 = vld [vmem:[%s3 + $0x40] sm:$0xff]
  %v148 = vld [vmem:[%s3 + $0x48] sm:$0xff]
  %v149 = vld [vmem:[%s3 + $0x50] sm:$0xff]
  %v150 = vld [vmem:[%s3 + $0x58] sm:$0xff]
  %v151 = vld [vmem:[%s3 + $0x60] sm:$0xff]
  %v152 = vld [vmem:[%s3 + $0x68] sm:$0xff]
  %v153 = vld [vmem:[%s3 + $0x70] sm:$0xff]
  %v154 = vld [vmem:[%s3 + $0x78] sm:$0xff]
  %v155 = vld [vmem:[%s4] sm:$0x1]
  %v157 = vlaneseq
  %v158 = vshrl.u32 %v157, 7
  %v159 = vsub.s32 0, %v158
  %v160 = vrot.slane %v155, %v159
  %162 = vmatprep.subr.mxu0 0.0
  %163 = vmatpush1.msra.mxu0 %v139
  %164 = vmatprep.subr.mxu0 0.0
  %165 = vmatpush1.msra.mxu0 %v140
  %166 = vmatprep.subr.mxu0 0.0
  %167 = vmatpush1.msra.mxu0 %v141
  %168 = vmatprep.subr.mxu0 0.0
  %169 = vmatpush1.msra.mxu0 %v142
  %170 = vmatprep.subr.mxu0 0.0
  %171 = vmatpush1.msra.mxu0 %v143
  %172 = vmatprep.subr.mxu0 0.0
  %173 = vmatpush1.msra.mxu0 %v144
  %174 = vmatprep.subr.mxu0 0.0
  %175 = vmatpush1.msra.mxu0 %v145
  %176 = vmatprep.subr.mxu0 0.0
  %177 = vmatpush1.msra.mxu0 %v146
  %178 = vmatprep.subr.mxu0 0.0
  %179 = vmatpush1.msra.mxu0 %v147
  %180 = vmatprep.subr.mxu0 0.0
  %181 = vmatpush1.msra.mxu0 %v148
  %182 = vmatprep.subr.mxu0 0.0
  %183 = vmatpush1.msra.mxu0 %v149
  %184 = vmatprep.subr.mxu0 0.0
  %185 = vmatpush1.msra.mxu0 %v150
  %186 = vmatprep.subr.mxu0 0.0
  %187 = vmatpush1.msra.mxu0 %v151
  %188 = vmatprep.subr.mxu0 0.0
  %189 = vmatpush1.msra.mxu0 %v152
  %190 = vmatprep.subr.mxu0 0.0
  %191 = vmatpush1.msra.mxu0 %v153
  %192 = vmatprep.subr.mxu0 0.0
  %193 = vmatpush1.msra.mxu0 %v154
  %194 = vmatprep.subr.mxu0 0.0
  %195 = vmatpush1.msra.mxu0 0.0
  %196 = vmatprep.subr.mxu0 0.0
  %197 = vmatpush1.msra.mxu0 0.0
  %198 = vmatprep.subr.mxu0 0.0
  %199 = vmatpush1.msra.mxu0 0.0
  %200 = vmatprep.subr.mxu0 0.0
  %201 = vmatpush1.msra.mxu0 0.0
  %202 = vmatprep.subr.mxu0 0.0
  %203 = vmatpush1.msra.mxu0 0.0
  %204 = vmatprep.subr.mxu0 0.0
  %205 = vmatpush1.msra.mxu0 0.0
  %206 = vmatprep.subr.mxu0 0.0
  %207 = vmatpush1.msra.mxu0 0.0
  %208 = vmatprep.subr.mxu0 0.0
  %209 = vmatpush1.msra.mxu0 0.0
  %210 = vmatprep.subr.mxu0 0.0
  %211 = vmatpush1.msra.mxu0 0.0
  %212 = vmatprep.subr.mxu0 0.0
  %213 = vmatpush1.msra.mxu0 0.0
  %214 = vmatprep.subr.mxu0 0.0
  %215 = vmatpush1.msra.mxu0 0.0
  %216 = vmatprep.subr.mxu0 0.0
  %217 = vmatpush1.msra.mxu0 0.0
  %218 = vmatprep.subr.mxu0 0.0
  %219 = vmatpush1.msra.mxu0 0.0
  %220 = vmatprep.subr.mxu0 0.0
  %221 = vmatpush1.msra.mxu0 0.0
  %222 = vmatprep.subr.mxu0 0.0
  %223 = vmatpush1.msra.mxu0 0.0
  %224 = vmatprep.subr.mxu0 0.0
  %225 = vmatpush1.msra.mxu0 0.0
  %226 = vmatprep.mubr.f32.mxu0 0.0
  %227 = vmatmul.mubr.f32.gmra.mrb[0].mxu0 %v138
  %v228 = vpop.f32.mrb[0].mxu0
  %v229 = vadd.f32 %v160, %v228
  %v230 = vpop.f32.mrb[0].mxu0
  %231 = vdwg.mxu0
  %v232 = vmax.f32 %v229, 0.0
  %v233 = vld [vmem:[%s5] sm:$0xff]
  %v234 = vld [vmem:[%s5 + $0x8] sm:$0xff]
  %v235 = vld [vmem:[%s5 + $0x10] sm:$0xff]
  %v236 = vld [vmem:[%s5 + $0x18] sm:$0xff]
  %v237 = vld [vmem:[%s5 + $0x20] sm:$0xff]
  %v238 = vld [vmem:[%s5 + $0x28] sm:$0xff]
  %v239 = vld [vmem:[%s5 + $0x30] sm:$0xff]
  %v240 = vld [vmem:[%s5 + $0x38] sm:$0xff]
  %v241 = vld [vmem:[%s5 + $0x40] sm:$0xff]
  %v242 = vld [vmem:[%s5 + $0x48] sm:$0xff]
  %v243 = vld [vmem:[%s5 + $0x50] sm:$0xff]
  %v244 = vld [vmem:[%s5 + $0x58] sm:$0xff]
  %v245 = vld [vmem:[%s5 + $0x60] sm:$0xff]
  %v246 = vld [vmem:[%s5 + $0x68] sm:$0xff]
  %v247 = vld [vmem:[%s5 + $0x70] sm:$0xff]
  %v248 = vld [vmem:[%s5 + $0x78] sm:$0xff]
  %v249 = vld [vmem:[%s6] sm:$0x1]
  %v251 = vlaneseq
  %v252 = vshrl.u32 %v251, 7
  %v253 = vsub.s32 0, %v252
  %v254 = vrot.slane %v249, %v253
  %256 = vmatprep.subr.mxu0 0.0
  %257 = vmatpush1.msra.mxu0 %v233
  %258 = vmatprep.subr.mxu0 0.0
  %259 = vmatpush1.msra.mxu0 %v234
  %260 = vmatprep.subr.mxu0 0.0
  %261 = vmatpush1.msra.mxu0 %v235
  %262 = vmatprep.subr.mxu0 0.0
  %263 = vmatpush1.msra.mxu0 %v236
  %264 = vmatprep.subr.mxu0 0.0
  %265 = vmatpush1.msra.mxu0 %v237
  %266 = vmatprep.subr.mxu0 0.0
  %267 = vmatpush1.msra.mxu0 %v238
  %268 = vmatprep.subr.mxu0 0.0
  %269 = vmatpush1.msra.mxu0 %v239
  %270 = vmatprep.subr.mxu0 0.0
  %271 = vmatpush1.msra.mxu0 %v240
  %272 = vmatprep.subr.mxu0 0.0
  %273 = vmatpush1.msra.mxu0 %v241
  %274 = vmatprep.subr.mxu0 0.0
  %275 = vmatpush1.msra.mxu0 %v242
  %276 = vmatprep.subr.mxu0 0.0
  %277 = vmatpush1.msra.mxu0 %v243
  %278 = vmatprep.subr.mxu0 0.0
  %279 = vmatpush1.msra.mxu0 %v244
  %280 = vmatprep.subr.mxu0 0.0
  %281 = vmatpush1.msra.mxu0 %v245
  %282 = vmatprep.subr.mxu0 0.0
  %283 = vmatpush1.msra.mxu0 %v246
  %284 = vmatprep.subr.mxu0 0.0
  %285 = vmatpush1.msra.mxu0 %v247
  %286 = vmatprep.subr.mxu0 0.0
  %287 = vmatpush1.msra.mxu0 %v248
  %288 = vmatprep.subr.mxu0 0.0
  %289 = vmatpush1.msra.mxu0 0.0
  %290 = vmatprep.subr.mxu0 0.0
  %291 = vmatpush1.msra.mxu0 0.0
  %292 = vmatprep.subr.mxu0 0.0
  %293 = vmatpush1.msra.mxu0 0.0
  %294 = vmatprep.subr.mxu0 0.0
  %295 = vmatpush1.msra.mxu0 0.0
  %296 = vmatprep.subr.mxu0 0.0
  %297 = vmatpush1.msra.mxu0 0.0
  %298 = vmatprep.subr.mxu0 0.0
  %299 = vmatpush1.msra.mxu0 0.0
  %300 = vmatprep.subr.mxu0 0.0
  %301 = vmatpush1.msra.mxu0 0.0
  %302 = vmatprep.subr.mxu0 0.0
  %303 = vmatpush1.msra.mxu0 0.0
  %304 = vmatprep.subr.mxu0 0.0
  %305 = vmatpush1.msra.mxu0 0.0
  %306 = vmatprep.subr.mxu0 0.0
  %307 = vmatpush1.msra.mxu0 0.0
  %308 = vmatprep.subr.mxu0 0.0
  %309 = vmatpush1.msra.mxu0 0.0
  %310 = vmatprep.subr.mxu0 0.0
  %311 = vmatpush1.msra.mxu0 0.0
  %312 = vmatprep.subr.mxu0 0.0
  %313 = vmatpush1.msra.mxu0 0.0
  %314 = vmatprep.subr.mxu0 0.0
  %315 = vmatpush1.msra.mxu0 0.0
  %316 = vmatprep.subr.mxu0 0.0
  %317 = vmatpush1.msra.mxu0 0.0
  %318 = vmatprep.subr.mxu0 0.0
  %319 = vmatpush1.msra.mxu0 0.0
  %320 = vmatprep.mubr.f32.mxu0 0.0
  %321 = vmatmul.mubr.f32.gmra.mrb[0].mxu0 %v232
  %v322 = vpop.f32.mrb[0].mxu0
  %v323 = vadd.f32 %v254, %v322
  %v324 = vpop.f32.mrb[0].mxu0
  %325 = vdwg.mxu0
  %v326 = vadd.f32 %v323, %v138
  %v327 = vmax.f32 %v326, 0.0
  %v328 = vld [vmem:[%s7] sm:$0xff]
  %v329 = vld [vmem:[%s7 + $0x8] sm:$0xff]
  %v330 = vld [vmem:[%s7 + $0x10] sm:$0xff]
  %v331 = vld [vmem:[%s7 + $0x18] sm:$0xff]
  %v332 = vld [vmem:[%s7 + $0x20] sm:$0xff]
  %v333 = vld [vmem:[%s7 + $0x28] sm:$0xff]
  %v334 = vld [vmem:[%s7 + $0x30] sm:$0xff]
  %v335 = vld [vmem:[%s7 + $0x38] sm:$0xff]
  %v336 = vld [vmem:[%s7 + $0x40] sm:$0xff]
  %v337 = vld [vmem:[%s7 + $0x48] sm:$0xff]
  %v338 = vld [vmem:[%s7 + $0x50] sm:$0xff]
  %v339 = vld [vmem:[%s7 + $0x58] sm:$0xff]
  %v340 = vld [vmem:[%s7 + $0x60] sm:$0xff]
  %v341 = vld [vmem:[%s7 + $0x68] sm:$0xff]
  %v342 = vld [vmem:[%s7 + $0x70] sm:$0xff]
  %v343 = vld [vmem:[%s7 + $0x78] sm:$0xff]
  %v344 = vld [vmem:[%s8] sm:$0x1]
  %v346 = vlaneseq
  %v347 = vshrl.u32 %v346, 7
  %v348 = vsub.s32 0, %v347
  %v349 = vrot.slane %v344, %v348
  %351 = vmatprep.subr.mxu0 0.0
  %352 = vmatpush1.msra.mxu0 %v328
  %353 = vmatprep.subr.mxu0 0.0
  %354 = vmatpush1.msra.mxu0 %v329
  %355 = vmatprep.subr.mxu0 0.0
  %356 = vmatpush1.msra.mxu0 %v330
  %357 = vmatprep.subr.mxu0 0.0
  %358 = vmatpush1.msra.mxu0 %v331
  %359 = vmatprep.subr.mxu0 0.0
  %360 = vmatpush1.msra.mxu0 %v332
  %361 = vmatprep.subr.mxu0 0.0
  %362 = vmatpush1.msra.mxu0 %v333
  %363 = vmatprep.subr.mxu0 0.0
  %364 = vmatpush1.msra.mxu0 %v334
  %365 = vmatprep.subr.mxu0 0.0
  %366 = vmatpush1.msra.mxu0 %v335
  %367 = vmatprep.subr.mxu0 0.0
  %368 = vmatpush1.msra.mxu0 %v336
  %369 = vmatprep.subr.mxu0 0.0
  %370 = vmatpush1.msra.mxu0 %v337
  %371 = vmatprep.subr.mxu0 0.0
  %372 = vmatpush1.msra.mxu0 %v338
  %373 = vmatprep.subr.mxu0 0.0
  %374 = vmatpush1.msra.mxu0 %v339
  %375 = vmatprep.subr.mxu0 0.0
  %376 = vmatpush1.msra.mxu0 %v340
  %377 = vmatprep.subr.mxu0 0.0
  %378 = vmatpush1.msra.mxu0 %v341
  %379 = vmatprep.subr.mxu0 0.0
  %380 = vmatpush1.msra.mxu0 %v342
  %381 = vmatprep.subr.mxu0 0.0
  %382 = vmatpush1.msra.mxu0 %v343
  %383 = vmatprep.subr.mxu0 0.0
  %384 = vmatpush1.msra.mxu0 0.0
  %385 = vmatprep.subr.mxu0 0.0
  %386 = vmatpush1.msra.mxu0 0.0
  %387 = vmatprep.subr.mxu0 0.0
  %388 = vmatpush1.msra.mxu0 0.0
  %389 = vmatprep.subr.mxu0 0.0
  %390 = vmatpush1.msra.mxu0 0.0
  %391 = vmatprep.subr.mxu0 0.0
  %392 = vmatpush1.msra.mxu0 0.0
  %393 = vmatprep.subr.mxu0 0.0
  %394 = vmatpush1.msra.mxu0 0.0
  %395 = vmatprep.subr.mxu0 0.0
  %396 = vmatpush1.msra.mxu0 0.0
  %397 = vmatprep.subr.mxu0 0.0
  %398 = vmatpush1.msra.mxu0 0.0
  %399 = vmatprep.subr.mxu0 0.0
  %400 = vmatpush1.msra.mxu0 0.0
  %401 = vmatprep.subr.mxu0 0.0
  %402 = vmatpush1.msra.mxu0 0.0
  %403 = vmatprep.subr.mxu0 0.0
  %404 = vmatpush1.msra.mxu0 0.0
  %405 = vmatprep.subr.mxu0 0.0
  %406 = vmatpush1.msra.mxu0 0.0
  %407 = vmatprep.subr.mxu0 0.0
  %408 = vmatpush1.msra.mxu0 0.0
  %409 = vmatprep.subr.mxu0 0.0
  %410 = vmatpush1.msra.mxu0 0.0
  %411 = vmatprep.subr.mxu0 0.0
  %412 = vmatpush1.msra.mxu0 0.0
  %413 = vmatprep.subr.mxu0 0.0
  %414 = vmatpush1.msra.mxu0 0.0
  %415 = vmatprep.mubr.f32.mxu0 0.0
  %416 = vmatmul.mubr.f32.gmra.mrb[0].mxu0 %v327
  %v417 = vpop.f32.mrb[0].mxu0
  %v418 = vadd.f32 %v349, %v417
  %v419 = vpop.f32.mrb[0].mxu0
  %420 = vdwg.mxu0
  %v421 = vmax.f32 %v418, 0.0
  %v422 = vld [vmem:[%s9] sm:$0xff]
  %v423 = vld [vmem:[%s9 + $0x8] sm:$0xff]
  %v424 = vld [vmem:[%s9 + $0x10] sm:$0xff]
  %v425 = vld [vmem:[%s9 + $0x18] sm:$0xff]
  %v426 = vld [vmem:[%s9 + $0x20] sm:$0xff]
  %v427 = vld [vmem:[%s9 + $0x28] sm:$0xff]
  %v428 = vld [vmem:[%s9 + $0x30] sm:$0xff]
  %v429 = vld [vmem:[%s9 + $0x38] sm:$0xff]
  %v430 = vld [vmem:[%s9 + $0x40] sm:$0xff]
  %v431 = vld [vmem:[%s9 + $0x48] sm:$0xff]
  %v432 = vld [vmem:[%s9 + $0x50] sm:$0xff]
  %v433 = vld [vmem:[%s9 + $0x58] sm:$0xff]
  %v434 = vld [vmem:[%s9 + $0x60] sm:$0xff]
  %v435 = vld [vmem:[%s9 + $0x68] sm:$0xff]
  %v436 = vld [vmem:[%s9 + $0x70] sm:$0xff]
  %v437 = vld [vmem:[%s9 + $0x78] sm:$0xff]
  %v438 = vld [vmem:[%s10] sm:$0x1]
  %v440 = vlaneseq
  %v441 = vshrl.u32 %v440, 7
  %v442 = vsub.s32 0, %v441
  %v443 = vrot.slane %v438, %v442
  %445 = vmatprep.subr.mxu0 0.0
  %446 = vmatpush1.msra.mxu0 %v422
  %447 = vmatprep.subr.mxu0 0.0
  %448 = vmatpush1.msra.mxu0 %v423
  %449 = vmatprep.subr.mxu0 0.0
  %450 = vmatpush1.msra.mxu0 %v424
  %451 = vmatprep.subr.mxu0 0.0
  %452 = vmatpush1.msra.mxu0 %v425
  %453 = vmatprep.subr.mxu0 0.0
  %454 = vmatpush1.msra.mxu0 %v426
  %455 = vmatprep.subr.mxu0 0.0
  %456 = vmatpush1.msra.mxu0 %v427
  %457 = vmatprep.subr.mxu0 0.0
  %458 = vmatpush1.msra.mxu0 %v428
  %459 = vmatprep.subr.mxu0 0.0
  %460 = vmatpush1.msra.mxu0 %v429
  %461 = vmatprep.subr.mxu0 0.0
  %462 = vmatpush1.msra.mxu0 %v430
  %463 = vmatprep.subr.mxu0 0.0
  %464 = vmatpush1.msra.mxu0 %v431
  %465 = vmatprep.subr.mxu0 0.0
  %466 = vmatpush1.msra.mxu0 %v432
  %467 = vmatprep.subr.mxu0 0.0
  %468 = vmatpush1.msra.mxu0 %v433
  %469 = vmatprep.subr.mxu0 0.0
  %470 = vmatpush1.msra.mxu0 %v434
  %471 = vmatprep.subr.mxu0 0.0
  %472 = vmatpush1.msra.mxu0 %v435
  %473 = vmatprep.subr.mxu0 0.0
  %474 = vmatpush1.msra.mxu0 %v436
  %475 = vmatprep.subr.mxu0 0.0
  %476 = vmatpush1.msra.mxu0 %v437
  %477 = vmatprep.subr.mxu0 0.0
  %478 = vmatpush1.msra.mxu0 0.0
  %479 = vmatprep.subr.mxu0 0.0
  %480 = vmatpush1.msra.mxu0 0.0
  %481 = vmatprep.subr.mxu0 0.0
  %482 = vmatpush1.msra.mxu0 0.0
  %483 = vmatprep.subr.mxu0 0.0
  %484 = vmatpush1.msra.mxu0 0.0
  %485 = vmatprep.subr.mxu0 0.0
  %486 = vmatpush1.msra.mxu0 0.0
  %487 = vmatprep.subr.mxu0 0.0
  %488 = vmatpush1.msra.mxu0 0.0
  %489 = vmatprep.subr.mxu0 0.0
  %490 = vmatpush1.msra.mxu0 0.0
  %491 = vmatprep.subr.mxu0 0.0
  %492 = vmatpush1.msra.mxu0 0.0
  %493 = vmatprep.subr.mxu0 0.0
  %494 = vmatpush1.msra.mxu0 0.0
  %495 = vmatprep.subr.mxu0 0.0
  %496 = vmatpush1.msra.mxu0 0.0
  %497 = vmatprep.subr.mxu0 0.0
  %498 = vmatpush1.msra.mxu0 0.0
  %499 = vmatprep.subr.mxu0 0.0
  %500 = vmatpush1.msra.mxu0 0.0
  %501 = vmatprep.subr.mxu0 0.0
  %502 = vmatpush1.msra.mxu0 0.0
  %503 = vmatprep.subr.mxu0 0.0
  %504 = vmatpush1.msra.mxu0 0.0
  %505 = vmatprep.subr.mxu0 0.0
  %506 = vmatpush1.msra.mxu0 0.0
  %507 = vmatprep.subr.mxu0 0.0
  %508 = vmatpush1.msra.mxu0 0.0
  %509 = vmatprep.mubr.f32.mxu0 0.0
  %510 = vmatmul.mubr.f32.gmra.mrb[0].mxu0 %v421
  %v511 = vpop.f32.mrb[0].mxu0
  %v512 = vadd.f32 %v443, %v511
  %v513 = vpop.f32.mrb[0].mxu0
  %514 = vdwg.mxu0
  %v515 = vadd.f32 %v512, %v327
  %v516 = vmax.f32 %v515, 0.0
  %v517 = vld [vmem:[%s11] sm:$0xff]
  %v518 = vld [vmem:[%s11 + $0x8] sm:$0xff]
  %v519 = vld [vmem:[%s11 + $0x10] sm:$0xff]
  %v520 = vld [vmem:[%s11 + $0x18] sm:$0xff]
  %v521 = vld [vmem:[%s11 + $0x20] sm:$0xff]
  %v522 = vld [vmem:[%s11 + $0x28] sm:$0xff]
  %v523 = vld [vmem:[%s11 + $0x30] sm:$0xff]
  %v524 = vld [vmem:[%s11 + $0x38] sm:$0xff]
  %v525 = vld [vmem:[%s11 + $0x40] sm:$0xff]
  %v526 = vld [vmem:[%s11 + $0x48] sm:$0xff]
  %v527 = vld [vmem:[%s11 + $0x50] sm:$0xff]
  %v528 = vld [vmem:[%s11 + $0x58] sm:$0xff]
  %v529 = vld [vmem:[%s11 + $0x60] sm:$0xff]
  %v530 = vld [vmem:[%s11 + $0x68] sm:$0xff]
  %v531 = vld [vmem:[%s11 + $0x70] sm:$0xff]
  %v532 = vld [vmem:[%s11 + $0x78] sm:$0xff]
  %v533 = vld [vmem:[%s12] sm:$0x1]
  %v535 = vlaneseq
  %v536 = vshrl.u32 %v535, 7
  %v537 = vsub.s32 0, %v536
  %v538 = vrot.slane %v533, %v537
  %540 = vmatprep.subr.mxu0 0.0
  %541 = vmatpush1.msra.mxu0 %v517
  %542 = vmatprep.subr.mxu0 0.0
  %543 = vmatpush1.msra.mxu0 %v518
  %544 = vmatprep.subr.mxu0 0.0
  %545 = vmatpush1.msra.mxu0 %v519
  %546 = vmatprep.subr.mxu0 0.0
  %547 = vmatpush1.msra.mxu0 %v520
  %548 = vmatprep.subr.mxu0 0.0
  %549 = vmatpush1.msra.mxu0 %v521
  %550 = vmatprep.subr.mxu0 0.0
  %551 = vmatpush1.msra.mxu0 %v522
  %552 = vmatprep.subr.mxu0 0.0
  %553 = vmatpush1.msra.mxu0 %v523
  %554 = vmatprep.subr.mxu0 0.0
  %555 = vmatpush1.msra.mxu0 %v524
  %556 = vmatprep.subr.mxu0 0.0
  %557 = vmatpush1.msra.mxu0 %v525
  %558 = vmatprep.subr.mxu0 0.0
  %559 = vmatpush1.msra.mxu0 %v526
  %560 = vmatprep.subr.mxu0 0.0
  %561 = vmatpush1.msra.mxu0 %v527
  %562 = vmatprep.subr.mxu0 0.0
  %563 = vmatpush1.msra.mxu0 %v528
  %564 = vmatprep.subr.mxu0 0.0
  %565 = vmatpush1.msra.mxu0 %v529
  %566 = vmatprep.subr.mxu0 0.0
  %567 = vmatpush1.msra.mxu0 %v530
  %568 = vmatprep.subr.mxu0 0.0
  %569 = vmatpush1.msra.mxu0 %v531
  %570 = vmatprep.subr.mxu0 0.0
  %571 = vmatpush1.msra.mxu0 %v532
  %572 = vmatprep.subr.mxu0 0.0
  %573 = vmatpush1.msra.mxu0 0.0
  %574 = vmatprep.subr.mxu0 0.0
  %575 = vmatpush1.msra.mxu0 0.0
  %576 = vmatprep.subr.mxu0 0.0
  %577 = vmatpush1.msra.mxu0 0.0
  %578 = vmatprep.subr.mxu0 0.0
  %579 = vmatpush1.msra.mxu0 0.0
  %580 = vmatprep.subr.mxu0 0.0
  %581 = vmatpush1.msra.mxu0 0.0
  %582 = vmatprep.subr.mxu0 0.0
  %583 = vmatpush1.msra.mxu0 0.0
  %584 = vmatprep.subr.mxu0 0.0
  %585 = vmatpush1.msra.mxu0 0.0
  %586 = vmatprep.subr.mxu0 0.0
  %587 = vmatpush1.msra.mxu0 0.0
  %588 = vmatprep.subr.mxu0 0.0
  %589 = vmatpush1.msra.mxu0 0.0
  %590 = vmatprep.subr.mxu0 0.0
  %591 = vmatpush1.msra.mxu0 0.0
  %592 = vmatprep.subr.mxu0 0.0
  %593 = vmatpush1.msra.mxu0 0.0
  %594 = vmatprep.subr.mxu0 0.0
  %595 = vmatpush1.msra.mxu0 0.0
  %596 = vmatprep.subr.mxu0 0.0
  %597 = vmatpush1.msra.mxu0 0.0
  %598 = vmatprep.subr.mxu0 0.0
  %599 = vmatpush1.msra.mxu0 0.0
  %600 = vmatprep.subr.mxu0 0.0
  %601 = vmatpush1.msra.mxu0 0.0
  %602 = vmatprep.subr.mxu0 0.0
  %603 = vmatpush1.msra.mxu0 0.0
  %604 = vmatprep.mubr.f32.mxu0 0.0
  %605 = vmatmul.mubr.f32.gmra.mrb[0].mxu0 %v516
  %v606 = vpop.f32.mrb[0].mxu0
  %v607 = vadd.f32 %v538, %v606
  %v608 = vpop.f32.mrb[0].mxu0
  %609 = vdwg.mxu0
  %610 = vst [vmem:[%s13] sm:$0xff] %v607
  // Predicated region
  $region54: #{resnet_forward.1} parent=0 // pred_check
    _
  $region55: #{resnet_forward.1} parent=0 // pred_check_branch
    %612 = sbr.rel (0) target = $region57
  $region56: #{resnet_forward.1} parent=0 // pred_region
    _
  $region57: #{resnet_forward.1} parent=0 // pred_fallthru
    _
  // Predicated region
  $region58: #{resnet_forward.1} parent=0 // pred_check
    _
  $region59: #{resnet_forward.1} parent=0 // pred_check_branch
    %614 = sbr.rel (0) target = $region61
  $region60: #{resnet_forward.1} parent=0 // pred_region
    _
  $region61: #{resnet_forward.1} parent=0 // pred_fallthru
    _

</llo_original>
